<compile_context>
chip_gen: v7x
topology: tpu7x:2x2x1
jax: 0.10.0
libtpu: 0.0.40
codegen_flags: <defaults>
</compile_context>

<pallas_src>
import jax
import jax.numpy as jnp
from jax.experimental import pallas as pl
from jax.experimental.pallas import tpu as pltpu


# ----------------------------------------------------------------------------
# Kernel
# ----------------------------------------------------------------------------
def _affine_kernel(x_ref, w_ref, b_ref, o_ref):
    # y = x @ W + b   (W, b already prepared for the chosen direction)
    x = x_ref[...]
    w = w_ref[...]
    if x.dtype != w.dtype:          # bf16-weight option: feed the MXU bf16
        x = x.astype(w.dtype)
    acc = jnp.dot(x, w, preferred_element_type=jnp.float32)
    o_ref[...] = (acc + b_ref[...].astype(jnp.float32)).astype(o_ref.dtype)


# ----------------------------------------------------------------------------
# Small helpers
# ----------------------------------------------------------------------------
def _round_up(x, m):
    return ((x + m - 1) // m) * m


def _cdiv(a, b):
    return (a + b - 1) // b


def _min_sublane(itemsize):
    # Packed sublane granularity: 8 rows (f32), 16 (bf16), 32 (int8/fp8).
    return max(8, 32 // int(itemsize))


def _vmem_capacity_bytes():
    try:
        info = pltpu.get_tpu_info()
        cap = getattr(info, "vmem_capacity_bytes", None)
        if cap:
            return int(cap)
    except Exception:
        pass
    return 64 * 1024 * 1024  # v7x floor — safe on every generation


def _block_spec(block_shape, index_map, *, single_buffer=False):
    """BlockSpec; request single-buffering (no re-DMA, half the VMEM) for
    operands whose block index is constant over the grid. Falls back silently
    on JAX builds without pipeline_mode support."""
    if single_buffer and hasattr(pl, "Buffered"):
        try:
            return pl.BlockSpec(block_shape, index_map,
                                pipeline_mode=pl.Buffered(1))
        except (TypeError, ValueError):
            pass
    return pl.BlockSpec(block_shape, index_map)


def _plan_tiles(batch, dim, dim_p, x_bytes, w_bytes, budget):
    """Pick (tile_b, tile_n). Keep W whole-resident while its (conservatively
    double-buffered) footprint stays under half the budget; otherwise N-tile
    at 256-lane blocks. Then take the biggest batch tile whose double-buffered
    x + out tiles fit the remainder."""
    tile_n = dim_p
    if 2 * dim * tile_n * w_bytes > budget // 2:
        tn = (budget // 2) // (2 * dim * w_bytes)
        tn = max(256, (tn // 256) * 256)
        tile_n = min(dim_p, tn)

    sub = _min_sublane(x_bytes)
    per_row = 2 * (dim + tile_n) * x_bytes                 # dbl-buffered x + out
    remaining = max(budget - 2 * dim * tile_n * w_bytes, per_row * sub)
    tb = remaining // per_row
    tb = min(tb, 2048, _round_up(batch, sub))
    if batch >= 512:                                       # >= 2 steps for dual-TC v7x
        tb = min(tb, _round_up(_cdiv(batch, 2), 256))
    if tb >= 256:
        tb = (tb // 256) * 256
    else:
        tb = max(sub, (tb // sub) * sub)
    return int(tb), int(tile_n)


# ----------------------------------------------------------------------------
# Host wrapper: y = x @ W + b   (W: [dim, dim_p] pre-padded, b: [1, dim_p] f32)
# ----------------------------------------------------------------------------
def _affine(x, w_pad, b_pad, dim, dim_p):
    batch = x.shape[0]
    x_bytes = x.dtype.itemsize
    w_bytes = w_pad.dtype.itemsize

    cap = _vmem_capacity_bytes()
    budget = int(cap * 0.55)
    tile_b, tile_n = _plan_tiles(batch, dim, dim_p, x_bytes, w_bytes, budget)

    nb = _cdiv(batch, tile_b)         # ragged last tile handled by OOB masking
    nn = _cdiv(dim_p, tile_n)
    grid = (nn, nb)                   # batch innermost -> W tile swapped only nn times

    flops = 2 * batch * dim * dim_p
    bytes_accessed = (batch * dim * x_bytes + dim * dim_p * w_bytes
                      + dim_p * b_pad.dtype.itemsize + batch * dim_p * x_bytes)
    cost = pl.CostEstimate(flops=flops, transcendentals=0,
                           bytes_accessed=bytes_accessed)

    needed = (2 * dim * tile_n * w_bytes + 2 * tile_n * b_pad.dtype.itemsize
              + 2 * tile_b * (dim + tile_n) * x_bytes)
    vmem_limit = max(32 * 1024 * 1024,
                     min(needed + 8 * 1024 * 1024, int(cap * 0.85)))

    def _call(single_buffer_resident):
        in_specs = [
            pl.BlockSpec((tile_b, dim), lambda j, i: (i, 0)),        # x tile (K unpadded)
            _block_spec((dim, tile_n), lambda j, i: (0, j),          # W (resident if nn==1)
                        single_buffer=single_buffer_resident),
            _block_spec((1, tile_n), lambda j, i: (0, j),            # b
                        single_buffer=single_buffer_resident),
        ]
        return pl.pallas_call(
            _affine_kernel,
            out_shape=jax.ShapeDtypeStruct((batch, dim_p), x.dtype),
            grid=grid,
            in_specs=in_specs,
            out_specs=pl.BlockSpec((tile_b, tile_n), lambda j, i: (i, j)),
            compiler_params=pltpu.CompilerParams(
                dimension_semantics=("parallel", "parallel"),
                vmem_limit_bytes=vmem_limit),
            cost_estimate=cost,
        )(x, w_pad, b_pad)

    want_single = (nn == 1)           # constant W/b block index -> single buffer
    try:
        out = _call(want_single)
    except Exception:
        if not want_single:
            raise
        out = _call(False)            # build without single-buffer support: retry default

    if dim_p != dim:                  # only for non-lane-aligned feature dims
        out = out[:, :dim]
    return out


# ----------------------------------------------------------------------------
# Module
# ----------------------------------------------------------------------------
class LinearTransform:
    """JAX/Pallas port of FrEIA's fixed linear_transform  y = Mx + b."""

    def __init__(self, M, b, param_dtype=None):
        M = jnp.asarray(M)
        b = jnp.asarray(b)
        dim = M.shape[0]
        self.dim = dim
        self.dim_p = _round_up(dim, 128)          # lane-dense output width
        pad_n = self.dim_p - dim

        # One-time parameter construction (plain JAX, not the hot path).
        M_param = M.T                              # nn.Parameter(M.t())
        M_inv = jnp.linalg.inv(M_param)            # nn.Parameter(M.t().inverse())
        b_row = b.reshape(1, dim).astype(jnp.float32)
        # Fold reverse bias: (x - b) @ Minv = x @ Minv + (-(b @ Minv))
        b_eff = -(b_row @ M_inv.astype(jnp.float32))

        if param_dtype is not None:                # optional bf16 weights
            M_param = M_param.astype(param_dtype)
            M_inv = M_inv.astype(param_dtype)

        # Hoisted, one-time padding of the constant operands (zero columns
        # never touch the real output region).
        self.W_fwd = jnp.pad(M_param, ((0, 0), (0, pad_n)))
        self.W_rev = jnp.pad(M_inv, ((0, 0), (0, pad_n)))
        self.b_fwd = jnp.pad(b_row, ((0, 0), (0, pad_n)))
        self.b_rev = jnp.pad(b_eff, ((0, 0), (0, pad_n)))

        # log|det M| via Cholesky, mirroring torch.potrf(M).diag().log().sum().
        # TODO(synk): assumes SPD M (as the original does); a slogdet fallback
        # would cover general invertible M.
        chol = jnp.linalg.cholesky(M.astype(jnp.float32))
        self.logDetM = jnp.sum(jnp.log(jnp.diag(chol)))

    def forward(self, x, rev=False):
        if isinstance(x, (list, tuple)):
            x = x[0]
        if not rev:
            return [_affine(x, self.W_fwd, self.b_fwd, self.dim, self.dim_p)]
        return [_affine(x, self.W_rev, self.b_rev, self.dim, self.dim_p)]

    def jacobian(self, x, rev=False):
        return -self.logDetM if rev else self.logDetM

    def output_dims(self, input_dims):
        return input_dims


# ----------------------------------------------------------------------------
# Demo / correctness check
# ----------------------------------------------------------------------------
if __name__ == "__main__":
    key = jax.random.PRNGKey(0)
    k1, k2, k3, k4 = jax.random.split(key, 4)

    # Case 1: small feature dim (exercises lane padding of W/b + column un-pad).
    batch, dim = 256, 32
    A = jax.random.normal(k1, (dim, dim), dtype=jnp.float32)
    M = A @ A.T + dim * jnp.eye(dim, dtype=jnp.float32)   # SPD -> invertible, Cholesky-able
    b = jax.random.normal(k2, (dim,), dtype=jnp.float32)
    x = jax.random.normal(k3, (batch, dim), dtype=jnp.float32)

    mod = LinearTransform(M, b)
    y = jax.block_until_ready(mod.forward(x, rev=False)[0])
    x_rec = jax.block_until_ready(mod.forward(y, rev=True)[0])

    y_ref = x @ M.T + b
    x_rec_ref = (y - b) @ jnp.linalg.inv(M.T)
    assert jnp.allclose(y, y_ref, rtol=1e-4, atol=1e-4), "forward mismatch"
    assert jnp.allclose(x_rec, x_rec_ref, rtol=1e-3, atol=1e-3), "reverse mismatch"
    assert jnp.allclose(x_rec, x, rtol=1e-2, atol=1e-2), "inverse round-trip mismatch"

    # Case 2: lane-aligned dim + ragged batch (exercises cdiv grid / OOB final tile).
    batch2, dim2 = 520, 128
    A2 = jax.random.normal(k4, (dim2, dim2), dtype=jnp.float32)
    M2 = A2 @ A2.T + dim2 * jnp.eye(dim2, dtype=jnp.float32)
    b2 = jax.random.normal(k2, (dim2,), dtype=jnp.float32)
    x2 = jax.random.normal(k3, (batch2, dim2), dtype=jnp.float32)

    mod2 = LinearTransform(M2, b2)
    y2 = jax.block_until_ready(mod2.forward(x2, rev=False)[0])
    y2_ref = x2 @ M2.T + b2
    assert jnp.allclose(y2, y2_ref, rtol=1e-3, atol=1e-3), "ragged-batch forward mismatch"

    print("KERNEL_OK")
</pallas_src>

<mosaic_0001>
module attributes {stable_mosaic.version = 11 : i64} {
  func.func @_affine_kernel(%arg0: i32, %arg1: i32, %arg2: memref<256x32xf32, #tpu.memory_space<vmem>>, %arg3: memref<32x128xf32, #tpu.memory_space<vmem>>, %arg4: memref<1x128xf32, #tpu.memory_space<vmem>>, %arg5: memref<256x128xf32, #tpu.memory_space<vmem>>) attributes {dimension_semantics = [#tpu.dimension_semantics<parallel>, #tpu.dimension_semantics<parallel>], iteration_bounds = array<i64: 1, 1>, scalar_prefetch = 0 : i64, scratch_operands = 0 : i64, tpu.core_type = #tpu.core_type<tc>, window_params = [{transform_indices = @transform_0, window_bounds = array<i64: 256, 32>}, {pipeline_mode = #tpu.pipeline_mode<synchronous>, transform_indices = @transform_1, window_bounds = array<i64: 32, 128>}, {pipeline_mode = #tpu.pipeline_mode<synchronous>, transform_indices = @transform_2, window_bounds = array<i64: 1, 128>}, {transform_indices = @transform_3, window_bounds = array<i64: 256, 128>}]} {
    %c0 = arith.constant 0 : index
    %c0_0 = arith.constant 0 : index
    %0 = vector.load %arg2[%c0, %c0_0] : memref<256x32xf32, #tpu.memory_space<vmem>>, vector<256x32xf32>
    %c0_1 = arith.constant 0 : index
    %c0_2 = arith.constant 0 : index
    %1 = vector.load %arg3[%c0_1, %c0_2] : memref<32x128xf32, #tpu.memory_space<vmem>>, vector<32x128xf32>
    %cst = arith.constant dense<0.000000e+00> : vector<256x128xf32>
    %2 = tpu.matmul %0, %1, %cst {dimension_numbers = #tpu.dot_dimension_numbers<[1], [0], [0], [1], [0, 0, 1, 1], [], []>} : vector<256x32xf32>, vector<32x128xf32>, vector<256x128xf32> -> vector<256x128xf32>
    %c0_3 = arith.constant 0 : index
    %c0_4 = arith.constant 0 : index
    %3 = vector.load %arg4[%c0_3, %c0_4] : memref<1x128xf32, #tpu.memory_space<vmem>>, vector<1x128xf32>
    %4 = vector.broadcast %3 : vector<1x128xf32> to vector<256x128xf32>
    %5 = arith.addf %2, %4 : vector<256x128xf32>
    %c0_5 = arith.constant 0 : index
    %c0_6 = arith.constant 0 : index
    %6 = vector.load %arg5[%c0_5, %c0_6] : memref<256x128xf32, #tpu.memory_space<vmem>>, vector<256x128xf32>
    tpu.vector_store %arg5[%c0_5, %c0_6], %5 {strides = array<i32>} : memref<256x128xf32, #tpu.memory_space<vmem>>, vector<256x128xf32>,
    return
  }
  func.func @transform_0(%arg0: i32, %arg1: i32) -> (i32, i32) {
    %c0_i32 = arith.constant 0 : i32
    %c0_i32_0 = arith.constant 0 : i32
    return %arg1, %c0_i32 : i32, i32
  }
  func.func @transform_1(%arg0: i32, %arg1: i32) -> (i32, i32) {
    %c0_i32 = arith.constant 0 : i32
    %c0_i32_0 = arith.constant 0 : i32
    return %c0_i32, %arg0 : i32, i32
  }
  func.func @transform_2(%arg0: i32, %arg1: i32) -> (i32, i32) {
    %c0_i32 = arith.constant 0 : i32
    %c0_i32_0 = arith.constant 0 : i32
    return %c0_i32, %arg0 : i32, i32
  }
  func.func @transform_3(%arg0: i32, %arg1: i32) -> (i32, i32) {
    %c0_i32 = arith.constant 0 : i32
    return %arg1, %arg0 : i32, i32
  }
}

module attributes {stable_mosaic.version = 11 : i64} {
  func.func @_affine_kernel(%arg0: i32, %arg1: i32, %arg2: memref<256x32xf32, #tpu.memory_space<vmem>>, %arg3: memref<32x128xf32, #tpu.memory_space<vmem>>, %arg4: memref<1x128xf32, #tpu.memory_space<vmem>>, %arg5: memref<256x128xf32, #tpu.memory_space<vmem>>) attributes {dimension_semantics = [#tpu.dimension_semantics<parallel>, #tpu.dimension_semantics<parallel>], iteration_bounds = array<i64: 1, 1>, scalar_prefetch = 0 : i64, scratch_operands = 0 : i64, tpu.core_type = #tpu.core_type<tc>, window_params = [{transform_indices = @transform_0, window_bounds = array<i64: 256, 32>}, {transform_indices = @transform_1, window_bounds = array<i64: 32, 128>}, {transform_indices = @transform_2, window_bounds = array<i64: 1, 128>}, {transform_indices = @transform_3, window_bounds = array<i64: 256, 128>}]} {
    %c0 = arith.constant 0 : index
    %c0_0 = arith.constant 0 : index
    %0 = vector.load %arg2[%c0, %c0_0] : memref<256x32xf32, #tpu.memory_space<vmem>>, vector<256x32xf32>
    %c0_1 = arith.constant 0 : index
    %c0_2 = arith.constant 0 : index
    %1 = vector.load %arg3[%c0_1, %c0_2] : memref<32x128xf32, #tpu.memory_space<vmem>>, vector<32x128xf32>
    %cst = arith.constant dense<0.000000e+00> : vector<256x128xf32>
    %2 = tpu.matmul %0, %1, %cst {dimension_numbers = #tpu.dot_dimension_numbers<[1], [0], [0], [1], [0, 0, 1, 1], [], []>} : vector<256x32xf32>, vector<32x128xf32>, vector<256x128xf32> -> vector<256x128xf32>
    %c0_3 = arith.constant 0 : index
    %c0_4 = arith.constant 0 : index
    %3 = vector.load %arg4[%c0_3, %c0_4] : memref<1x128xf32, #tpu.memory_space<vmem>>, vector<1x128xf32>
    %4 = vector.broadcast %3 : vector<1x128xf32> to vector<256x128xf32>
    %5 = arith.addf %2, %4 : vector<256x128xf32>
    %c0_5 = arith.constant 0 : index
    %c0_6 = arith.constant 0 : index
    %6 = vector.load %arg5[%c0_5, %c0_6] : memref<256x128xf32, #tpu.memory_space<vmem>>, vector<256x128xf32>
    tpu.vector_store %arg5[%c0_5, %c0_6], %5 {strides = array<i32>} : memref<256x128xf32, #tpu.memory_space<vmem>>, vector<256x128xf32>,
    return
  }
  func.func @transform_0(%arg0: i32, %arg1: i32) -> (i32, i32) {
    %c0_i32 = arith.constant 0 : i32
    %c0_i32_0 = arith.constant 0 : i32
    return %arg1, %c0_i32 : i32, i32
  }
  func.func @transform_1(%arg0: i32, %arg1: i32) -> (i32, i32) {
    %c0_i32 = arith.constant 0 : i32
    %c0_i32_0 = arith.constant 0 : i32
    return %c0_i32, %arg0 : i32, i32
  }
  func.func @transform_2(%arg0: i32, %arg1: i32) -> (i32, i32) {
    %c0_i32 = arith.constant 0 : i32
    %c0_i32_0 = arith.constant 0 : i32
    return %c0_i32, %arg0 : i32, i32
  }
  func.func @transform_3(%arg0: i32, %arg1: i32) -> (i32, i32) {
    %c0_i32 = arith.constant 0 : i32
    return %arg1, %arg0 : i32, i32
  }
}

</mosaic_0001>

<llo_original>
// kernel: tpu_custom_call.1
$region0: #{tpu_custom_call.1}
  #allocation0 [shape = 'u32[]', space=smem, size = 0x4, offset = 0x4, fixed_abs, tag = 'smem constant byte address 0x4 - core index']
  #allocation1 [shape = 'u32[144,128]{1,0:T(1,128)}', space=vmem, size = 0x12000, scoped, tag = 'internal scratch']
  %s0 = inlined_call_operand.vmem [shape: f32[256,32], index: 0, kind: input, shape index: {}]
  %s1 = inlined_call_operand.vmem [shape: f32[32,128], index: 1, kind: input, shape index: {}]
  %s2 = inlined_call_operand.vmem [shape: f32[1,128], index: 2, kind: input, shape index: {}]
  %s3 = inlined_call_operand.hbm [shape: f32[256,128], index: 3, kind: output, shape index: {}]
  %s4 = sld [smem:[#allocation0]]
  $region22: #{tpu_custom_call.1} parent=0
    _
  %s6 = ssub.s32 1, %s4
  %s7 = scalar_select 0, %s6, %s4
  $region1: #{tpu_custom_call.1} parent=0
    #allocation2 [shape = 'u8[131072]{0}', space=vmem, size = 0x20000, scoped, tag = 'output window, operand 0, single buffered']
    #allocation3 [shape = 's32[1]{0}', space=sflag, size = 0x4, scoped, tag = 'scoped memory for tpu_custom_call.1']
    %8 = vsyncpa [#allocation3], 0
    // Predicated region
    $region2: #{tpu_custom_call.1} parent=1 // pred_check
      _
    $region3: #{tpu_custom_call.1} parent=1 // pred_check_branch
      %10 = sbr.rel (0) target = $region5
    $region4: #{tpu_custom_call.1} parent=1 // pred_region
      _
    $region5: #{tpu_custom_call.1} parent=1 // pred_fallthru
      _
    // Predicated region
    $region6: #{tpu_custom_call.1} parent=1 // pred_check
      _
    $region7: #{tpu_custom_call.1} parent=1 // pred_check_branch
      %12 = sbr.rel (0) target = $region9
    $region8: #{tpu_custom_call.1} parent=1 // pred_region
      _
    $region9: #{tpu_custom_call.1} parent=1 // pred_fallthru
      _
    // Predicated region
    $region10: #{tpu_custom_call.1} parent=1 // pred_check
      _
    $region11: #{tpu_custom_call.1} parent=1 // pred_check_branch
      %14 = sbr.rel (0) target = $region13
    $region12: #{tpu_custom_call.1} parent=1 // pred_region
      _
    $region13: #{tpu_custom_call.1} parent=1 // pred_fallthru
      _
    %v15 = vld [vmem:[%s0] sm:$0xff]
    %v16 = vld [vmem:[%s0 + $0x8] sm:$0xff]
    %v17 = vld [vmem:[%s0 + $0x10] sm:$0xff]
    %v18 = vld [vmem:[%s0 + $0x18] sm:$0xff]
    %v19 = vld [vmem:[%s0 + $0x20] sm:$0xff]
    %v20 = vld [vmem:[%s0 + $0x28] sm:$0xff]
    %v21 = vld [vmem:[%s0 + $0x30] sm:$0xff]
    %v22 = vld [vmem:[%s0 + $0x38] sm:$0xff]
    %v23 = vld [vmem:[%s0 + $0x40] sm:$0xff]
    %v24 = vld [vmem:[%s0 + $0x48] sm:$0xff]
    %v25 = vld [vmem:[%s0 + $0x50] sm:$0xff]
    %v26 = vld [vmem:[%s0 + $0x58] sm:$0xff]
    %v27 = vld [vmem:[%s0 + $0x60] sm:$0xff]
    %v28 = vld [vmem:[%s0 + $0x68] sm:$0xff]
    %v29 = vld [vmem:[%s0 + $0x70] sm:$0xff]
    %v30 = vld [vmem:[%s0 + $0x78] sm:$0xff]
    %v31 = vld [vmem:[%s0 + $0x80] sm:$0xff]
    %v32 = vld [vmem:[%s0 + $0x88] sm:$0xff]
    %v33 = vld [vmem:[%s0 + $0x90] sm:$0xff]
    %v34 = vld [vmem:[%s0 + $0x98] sm:$0xff]
    %v35 = vld [vmem:[%s0 + $0xa0] sm:$0xff]
    %v36 = vld [vmem:[%s0 + $0xa8] sm:$0xff]
    %v37 = vld [vmem:[%s0 + $0xb0] sm:$0xff]
    %v38 = vld [vmem:[%s0 + $0xb8] sm:$0xff]
    %v39 = vld [vmem:[%s0 + $0xc0] sm:$0xff]
    %v40 = vld [vmem:[%s0 + $0xc8] sm:$0xff]
    %v41 = vld [vmem:[%s0 + $0xd0] sm:$0xff]
    %v42 = vld [vmem:[%s0 + $0xd8] sm:$0xff]
    %v43 = vld [vmem:[%s0 + $0xe0] sm:$0xff]
    %v44 = vld [vmem:[%s0 + $0xe8] sm:$0xff]
    %v45 = vld [vmem:[%s0 + $0xf0] sm:$0xff]
    %v46 = vld [vmem:[%s0 + $0xf8] sm:$0xff]
    %v47 = vld [vmem:[%s1] sm:$0xff]
    %v48 = vld [vmem:[%s1 + $0x8] sm:$0xff]
    %v49 = vld [vmem:[%s1 + $0x10] sm:$0xff]
    %v50 = vld [vmem:[%s1 + $0x18] sm:$0xff]
    %v51 = vld [vmem:[%s2] sm:$0x1]
    %v53 = vlaneseq
    %v54 = vshrl.u32 %v53, 7
    %v55 = vsub.s32 0, %v54
    %v56 = vrot.slane %v51, %v55
    %vm58 = vcmask 261120
    %v60 = vsel %vm58, %v15, 0
    %v63 = vsel %vm58, %v16, 0
    %v66 = vsel %vm58, %v17, 0
    %v69 = vsel %vm58, %v18, 0
    %v72 = vsel %vm58, %v19, 0
    %v75 = vsel %vm58, %v20, 0
    %v78 = vsel %vm58, %v21, 0
    %v81 = vsel %vm58, %v22, 0
    %v84 = vsel %vm58, %v23, 0
    %v87 = vsel %vm58, %v24, 0
    %v90 = vsel %vm58, %v25, 0
    %v93 = vsel %vm58, %v26, 0
    %v96 = vsel %vm58, %v27, 0
    %v99 = vsel %vm58, %v28, 0
    %v102 = vsel %vm58, %v29, 0
    %v105 = vsel %vm58, %v30, 0
    %v108 = vsel %vm58, %v31, 0
    %v111 = vsel %vm58, %v32, 0
    %v114 = vsel %vm58, %v33, 0
    %v117 = vsel %vm58, %v34, 0
    %v120 = vsel %vm58, %v35, 0
    %v123 = vsel %vm58, %v36, 0
    %v126 = vsel %vm58, %v37, 0
    %v129 = vsel %vm58, %v38, 0
    %v132 = vsel %vm58, %v39, 0
    %v135 = vsel %vm58, %v40, 0
    %v138 = vsel %vm58, %v41, 0
    %v141 = vsel %vm58, %v42, 0
    %v144 = vsel %vm58, %v43, 0
    %v147 = vsel %vm58, %v44, 0
    %v150 = vsel %vm58, %v45, 0
    %v153 = vsel %vm58, %v46, 0
    %155 = vmatprep.subr.mxu0 0.0
    %156 = vmatpush1.msra.mxu0 %v47
    %157 = vmatprep.subr.mxu0 0.0
    %158 = vmatpush1.msra.mxu0 %v48
    %159 = vmatprep.subr.mxu0 0.0
    %160 = vmatpush1.msra.mxu0 %v49
    %161 = vmatprep.subr.mxu0 0.0
    %162 = vmatpush1.msra.mxu0 %v50
    %163 = vmatprep.subr.mxu0 0.0
    %164 = vmatpush1.msra.mxu0 0.0
    %165 = vmatprep.subr.mxu0 0.0
    %166 = vmatpush1.msra.mxu0 0.0
    %167 = vmatprep.subr.mxu0 0.0
    %168 = vmatpush1.msra.mxu0 0.0
    %169 = vmatprep.subr.mxu0 0.0
    %170 = vmatpush1.msra.mxu0 0.0
    %171 = vmatprep.subr.mxu0 0.0
    %172 = vmatpush1.msra.mxu0 0.0
    %173 = vmatprep.subr.mxu0 0.0
    %174 = vmatpush1.msra.mxu0 0.0
    %175 = vmatprep.subr.mxu0 0.0
    %176 = vmatpush1.msra.mxu0 0.0
    %177 = vmatprep.subr.mxu0 0.0
    %178 = vmatpush1.msra.mxu0 0.0
    %179 = vmatprep.subr.mxu0 0.0
    %180 = vmatpush1.msra.mxu0 0.0
    %181 = vmatprep.subr.mxu0 0.0
    %182 = vmatpush1.msra.mxu0 0.0
    %183 = vmatprep.subr.mxu0 0.0
    %184 = vmatpush1.msra.mxu0 0.0
    %185 = vmatprep.subr.mxu0 0.0
    %186 = vmatpush1.msra.mxu0 0.0
    %187 = vmatprep.subr.mxu0 0.0
    %188 = vmatpush1.msra.mxu0 0.0
    %189 = vmatprep.subr.mxu0 0.0
    %190 = vmatpush1.msra.mxu0 0.0
    %191 = vmatprep.subr.mxu0 0.0
    %192 = vmatpush1.msra.mxu0 0.0
    %193 = vmatprep.subr.mxu0 0.0
    %194 = vmatpush1.msra.mxu0 0.0
    %195 = vmatprep.subr.mxu0 0.0
    %196 = vmatpush1.msra.mxu0 0.0
    %197 = vmatprep.subr.mxu0 0.0
    %198 = vmatpush1.msra.mxu0 0.0
    %199 = vmatprep.subr.mxu0 0.0
    %200 = vmatpush1.msra.mxu0 0.0
    %201 = vmatprep.subr.mxu0 0.0
    %202 = vmatpush1.msra.mxu0 0.0
    %203 = vmatprep.subr.mxu0 0.0
    %204 = vmatpush1.msra.mxu0 0.0
    %205 = vmatprep.subr.mxu0 0.0
    %206 = vmatpush1.msra.mxu0 0.0
    %207 = vmatprep.subr.mxu0 0.0
    %208 = vmatpush1.msra.mxu0 0.0
    %209 = vmatprep.subr.mxu0 0.0
    %210 = vmatpush1.msra.mxu0 0.0
    %211 = vmatprep.subr.mxu0 0.0
    %212 = vmatpush1.msra.mxu0 0.0
    %213 = vmatprep.subr.mxu0 0.0
    %214 = vmatpush1.msra.mxu0 0.0
    %215 = vmatprep.subr.mxu0 0.0
    %216 = vmatpush1.msra.mxu0 0.0
    %217 = vmatprep.subr.mxu0 0.0
    %218 = vmatpush1.msra.mxu0 0.0
    %219 = vmatprep.mubr.f32.mxu0 0.0
    %220 = vmatmul.mubr.f32.gmra.mrb[0].mxu0 %v60
    %v221 = vpop.f32.mrb[0].mxu0
    %v222 = vadd.f32 %v56, %v221
    %v223 = vpop.f32.mrb[0].mxu0
    %224 = vmatprep.mubr.f32.mxu0 0.0
    %225 = vmatmul.mubr.f32.gmra.mrb[0].mxu0 %v63
    %v226 = vpop.f32.mrb[0].mxu0
    %v227 = vadd.f32 %v56, %v226
    %v228 = vpop.f32.mrb[0].mxu0
    %229 = vmatprep.mubr.f32.mxu0 0.0
    %230 = vmatmul.mubr.f32.gmra.mrb[0].mxu0 %v66
    %v231 = vpop.f32.mrb[0].mxu0
    %v232 = vadd.f32 %v56, %v231
    %v233 = vpop.f32.mrb[0].mxu0
    %234 = vmatprep.mubr.f32.mxu0 0.0
    %235 = vmatmul.mubr.f32.gmra.mrb[0].mxu0 %v69
    %v236 = vpop.f32.mrb[0].mxu0
    %v237 = vadd.f32 %v56, %v236
    %v238 = vpop.f32.mrb[0].mxu0
    %239 = vmatprep.mubr.f32.mxu0 0.0
    %240 = vmatmul.mubr.f32.gmra.mrb[0].mxu0 %v72
    %v241 = vpop.f32.mrb[0].mxu0
    %v242 = vadd.f32 %v56, %v241
    %v243 = vpop.f32.mrb[0].mxu0
    %244 = vmatprep.mubr.f32.mxu0 0.0
    %245 = vmatmul.mubr.f32.gmra.mrb[0].mxu0 %v75
    %v246 = vpop.f32.mrb[0].mxu0
    %v247 = vadd.f32 %v56, %v246
    %v248 = vpop.f32.mrb[0].mxu0
    %249 = vmatprep.mubr.f32.mxu0 0.0
    %250 = vmatmul.mubr.f32.gmra.mrb[0].mxu0 %v78
    %v251 = vpop.f32.mrb[0].mxu0
    %v252 = vadd.f32 %v56, %v251
    %v253 = vpop.f32.mrb[0].mxu0
    %254 = vmatprep.mubr.f32.mxu0 0.0
    %255 = vmatmul.mubr.f32.gmra.mrb[0].mxu0 %v81
    %v256 = vpop.f32.mrb[0].mxu0
    %v257 = vadd.f32 %v56, %v256
    %v258 = vpop.f32.mrb[0].mxu0
    %259 = vmatprep.mubr.f32.mxu0 0.0
    %260 = vmatmul.mubr.f32.gmra.mrb[0].mxu0 %v84
    %v261 = vpop.f32.mrb[0].mxu0
    %v262 = vadd.f32 %v56, %v261
    %v263 = vpop.f32.mrb[0].mxu0
    %264 = vmatprep.mubr.f32.mxu0 0.0
    %265 = vmatmul.mubr.f32.gmra.mrb[0].mxu0 %v87
    %v266 = vpop.f32.mrb[0].mxu0
    %v267 = vadd.f32 %v56, %v266
    %v268 = vpop.f32.mrb[0].mxu0
    %269 = vmatprep.mubr.f32.mxu0 0.0
    %270 = vmatmul.mubr.f32.gmra.mrb[0].mxu0 %v90
    %v271 = vpop.f32.mrb[0].mxu0
    %v272 = vadd.f32 %v56, %v271
    %v273 = vpop.f32.mrb[0].mxu0
    %274 = vmatprep.mubr.f32.mxu0 0.0
    %275 = vmatmul.mubr.f32.gmra.mrb[0].mxu0 %v93
    %v276 = vpop.f32.mrb[0].mxu0
    %v277 = vadd.f32 %v56, %v276
    %v278 = vpop.f32.mrb[0].mxu0
    %279 = vmatprep.mubr.f32.mxu0 0.0
    %280 = vmatmul.mubr.f32.gmra.mrb[0].mxu0 %v96
    %v281 = vpop.f32.mrb[0].mxu0
    %v282 = vadd.f32 %v56, %v281
    %v283 = vpop.f32.mrb[0].mxu0
    %284 = vmatprep.mubr.f32.mxu0 0.0
    %285 = vmatmul.mubr.f32.gmra.mrb[0].mxu0 %v99
    %v286 = vpop.f32.mrb[0].mxu0
    %v287 = vadd.f32 %v56, %v286
    %v288 = vpop.f32.mrb[0].mxu0
    %289 = vmatprep.mubr.f32.mxu0 0.0
    %290 = vmatmul.mubr.f32.gmra.mrb[0].mxu0 %v102
    %v291 = vpop.f32.mrb[0].mxu0
    %v292 = vadd.f32 %v56, %v291
    %v293 = vpop.f32.mrb[0].mxu0
    %294 = vmatprep.mubr.f32.mxu0 0.0
    %295 = vmatmul.mubr.f32.gmra.mrb[0].mxu0 %v105
    %v296 = vpop.f32.mrb[0].mxu0
    %v297 = vadd.f32 %v56, %v296
    %v298 = vpop.f32.mrb[0].mxu0
    %299 = vmatprep.mubr.f32.mxu0 0.0
    %300 = vmatmul.mubr.f32.gmra.mrb[0].mxu0 %v108
    %v301 = vpop.f32.mrb[0].mxu0
    %v302 = vadd.f32 %v56, %v301
    %v303 = vpop.f32.mrb[0].mxu0
    %304 = vmatprep.mubr.f32.mxu0 0.0
    %305 = vmatmul.mubr.f32.gmra.mrb[0].mxu0 %v111
    %v306 = vpop.f32.mrb[0].mxu0
    %v307 = vadd.f32 %v56, %v306
    %v308 = vpop.f32.mrb[0].mxu0
    %309 = vmatprep.mubr.f32.mxu0 0.0
    %310 = vmatmul.mubr.f32.gmra.mrb[0].mxu0 %v114
    %v311 = vpop.f32.mrb[0].mxu0
    %v312 = vadd.f32 %v56, %v311
    %v313 = vpop.f32.mrb[0].mxu0
    %314 = vmatprep.mubr.f32.mxu0 0.0
    %315 = vmatmul.mubr.f32.gmra.mrb[0].mxu0 %v117
    %v316 = vpop.f32.mrb[0].mxu0
    %v317 = vadd.f32 %v56, %v316
    %v318 = vpop.f32.mrb[0].mxu0
    %319 = vmatprep.mubr.f32.mxu0 0.0
    %320 = vmatmul.mubr.f32.gmra.mrb[0].mxu0 %v120
    %v321 = vpop.f32.mrb[0].mxu0
    %v322 = vadd.f32 %v56, %v321
    %v323 = vpop.f32.mrb[0].mxu0
    %324 = vmatprep.mubr.f32.mxu0 0.0
    %325 = vmatmul.mubr.f32.gmra.mrb[0].mxu0 %v123
    %v326 = vpop.f32.mrb[0].mxu0
    %v327 = vadd.f32 %v56, %v326
    %v328 = vpop.f32.mrb[0].mxu0
    %329 = vmatprep.mubr.f32.mxu0 0.0
    %330 = vmatmul.mubr.f32.gmra.mrb[0].mxu0 %v126
    %v331 = vpop.f32.mrb[0].mxu0
    %v332 = vadd.f32 %v56, %v331
    %v333 = vpop.f32.mrb[0].mxu0
    %334 = vmatprep.mubr.f32.mxu0 0.0
    %335 = vmatmul.mubr.f32.gmra.mrb[0].mxu0 %v129
    %v336 = vpop.f32.mrb[0].mxu0
    %v337 = vadd.f32 %v56, %v336
    %v338 = vpop.f32.mrb[0].mxu0
    %339 = vmatprep.mubr.f32.mxu0 0.0
    %340 = vmatmul.mubr.f32.gmra.mrb[0].mxu0 %v132
    %v341 = vpop.f32.mrb[0].mxu0
    %v342 = vadd.f32 %v56, %v341
    %v343 = vpop.f32.mrb[0].mxu0
    %344 = vmatprep.mubr.f32.mxu0 0.0
    %345 = vmatmul.mubr.f32.gmra.mrb[0].mxu0 %v135
    %v346 = vpop.f32.mrb[0].mxu0
    %v347 = vadd.f32 %v56, %v346
    %v348 = vpop.f32.mrb[0].mxu0
    %349 = vmatprep.mubr.f32.mxu0 0.0
    %350 = vmatmul.mubr.f32.gmra.mrb[0].mxu0 %v138
    %v351 = vpop.f32.mrb[0].mxu0
    %v352 = vadd.f32 %v56, %v351
    %v353 = vpop.f32.mrb[0].mxu0
    %354 = vmatprep.mubr.f32.mxu0 0.0
    %355 = vmatmul.mubr.f32.gmra.mrb[0].mxu0 %v141
    %v356 = vpop.f32.mrb[0].mxu0
    %v357 = vadd.f32 %v56, %v356
    %v358 = vpop.f32.mrb[0].mxu0
    %359 = vmatprep.mubr.f32.mxu0 0.0
    %360 = vmatmul.mubr.f32.gmra.mrb[0].mxu0 %v144
    %v361 = vpop.f32.mrb[0].mxu0
    %v362 = vadd.f32 %v56, %v361
    %v363 = vpop.f32.mrb[0].mxu0
    %364 = vmatprep.mubr.f32.mxu0 0.0
    %365 = vmatmul.mubr.f32.gmra.mrb[0].mxu0 %v147
    %v366 = vpop.f32.mrb[0].mxu0
    %v367 = vadd.f32 %v56, %v366
    %v368 = vpop.f32.mrb[0].mxu0
    %369 = vmatprep.mubr.f32.mxu0 0.0
    %370 = vmatmul.mubr.f32.gmra.mrb[0].mxu0 %v150
    %v371 = vpop.f32.mrb[0].mxu0
    %v372 = vadd.f32 %v56, %v371
    %v373 = vpop.f32.mrb[0].mxu0
    %374 = vmatprep.mubr.f32.mxu0 0.0
    %375 = vmatmul.mubr.f32.gmra.mrb[0].mxu0 %v153
    %v376 = vpop.f32.mrb[0].mxu0
    %v377 = vadd.f32 %v56, %v376
    %v378 = vpop.f32.mrb[0].mxu0
    %379 = vdwg.mxu0
    %380 = vst [vmem:[#allocation2] sm:$0xff] %v222
    %381 = vst [vmem:[#allocation2 + $0x8] sm:$0xff] %v227
    %382 = vst [vmem:[#allocation2 + $0x10] sm:$0xff] %v232
    %383 = vst [vmem:[#allocation2 + $0x18] sm:$0xff] %v237
    %384 = vst [vmem:[#allocation2 + $0x20] sm:$0xff] %v242
    %385 = vst [vmem:[#allocation2 + $0x28] sm:$0xff] %v247
    %386 = vst [vmem:[#allocation2 + $0x30] sm:$0xff] %v252
    %387 = vst [vmem:[#allocation2 + $0x38] sm:$0xff] %v257
    %388 = vst [vmem:[#allocation2 + $0x40] sm:$0xff] %v262
    %389 = vst [vmem:[#allocation2 + $0x48] sm:$0xff] %v267
    %390 = vst [vmem:[#allocation2 + $0x50] sm:$0xff] %v272
    %391 = vst [vmem:[#allocation2 + $0x58] sm:$0xff] %v277
    %392 = vst [vmem:[#allocation2 + $0x60] sm:$0xff] %v282
    %393 = vst [vmem:[#allocation2 + $0x68] sm:$0xff] %v287
    %394 = vst [vmem:[#allocation2 + $0x70] sm:$0xff] %v292
    %395 = vst [vmem:[#allocation2 + $0x78] sm:$0xff] %v297
    %396 = vst [vmem:[#allocation2 + $0x80] sm:$0xff] %v302
    %397 = vst [vmem:[#allocation2 + $0x88] sm:$0xff] %v307
    %398 = vst [vmem:[#allocation2 + $0x90] sm:$0xff] %v312
    %399 = vst [vmem:[#allocation2 + $0x98] sm:$0xff] %v317
    %400 = vst [vmem:[#allocation2 + $0xa0] sm:$0xff] %v322
    %401 = vst [vmem:[#allocation2 + $0xa8] sm:$0xff] %v327
    %402 = vst [vmem:[#allocation2 + $0xb0] sm:$0xff] %v332
    %403 = vst [vmem:[#allocation2 + $0xb8] sm:$0xff] %v337
    %404 = vst [vmem:[#allocation2 + $0xc0] sm:$0xff] %v342
    %405 = vst [vmem:[#allocation2 + $0xc8] sm:$0xff] %v347
    %406 = vst [vmem:[#allocation2 + $0xd0] sm:$0xff] %v352
    %407 = vst [vmem:[#allocation2 + $0xd8] sm:$0xff] %v357
    %408 = vst [vmem:[#allocation2 + $0xe0] sm:$0xff] %v362
    %409 = vst [vmem:[#allocation2 + $0xe8] sm:$0xff] %v367
    %410 = vst [vmem:[#allocation2 + $0xf0] sm:$0xff] %v372
    %411 = vst [vmem:[#allocation2 + $0xf8] sm:$0xff] %v377
    // Predicated region
    $region14: #{tpu_custom_call.1} parent=1 // pred_check
      _
    $region15: #{tpu_custom_call.1} parent=1 // pred_check_branch
      %413 = sbr.rel (0) target = $region17
    $region16: #{tpu_custom_call.1} parent=1 // pred_region
      %s415 = ssub.s32 4096, 4096
      %416 = vsyncadd [#allocation3], %s415
      %s417 = sshll.u32 [#allocation2], 4
      %s418 = int_to_ptr.vmem [resolvable:$true] %s417
      %423 = dma.vmem_to_hbm [thread:$0]  %s418, 4096, %s3, [#allocation3], 128, 128, 8
    $region17: #{tpu_custom_call.1} parent=1 // pred_fallthru
      _
    // Predicated region
    $region18: #{tpu_custom_call.1} parent=1 // pred_check
      _
    $region19: #{tpu_custom_call.1} parent=1 // pred_check_branch
      %425 = sbr.rel (0) target = $region21
    $region20: #{tpu_custom_call.1} parent=1 // pred_region
      %426 = dma.done [#allocation3], 4096
    $region21: #{tpu_custom_call.1} parent=1 // pred_fallthru
      _
    %427 = vsyncpa [#allocation3], 1

// kernel: tpu_custom_call.1
$region0: #{tpu_custom_call.1}
  #allocation0 [shape = 'u32[]', space=smem, size = 0x4, offset = 0x4, fixed_abs, tag = 'smem constant byte address 0x4 - core index']
  #allocation1 [shape = 'u32[144,128]{1,0:T(1,128)}', space=vmem, size = 0x12000, scoped, tag = 'internal scratch']
  %s0 = inlined_call_operand.vmem [shape: f32[256,32], index: 0, kind: input, shape index: {}]
  %s1 = inlined_call_operand.vmem [shape: f32[32,128], index: 1, kind: input, shape index: {}]
  %s2 = inlined_call_operand.vmem [shape: f32[1,128], index: 2, kind: input, shape index: {}]
  %s3 = inlined_call_operand.hbm [shape: f32[256,128], index: 3, kind: output, shape index: {}]
  %s4 = sld [smem:[#allocation0]]
  $region22: #{tpu_custom_call.1} parent=0
    _
  %s6 = ssub.s32 1, %s4
  %s7 = scalar_select 0, %s6, %s4
  $region1: #{tpu_custom_call.1} parent=0
    #allocation2 [shape = 'u8[131072]{0}', space=vmem, size = 0x20000, scoped, tag = 'output window, operand 0, single buffered']
    #allocation3 [shape = 's32[1]{0}', space=sflag, size = 0x4, scoped, tag = 'scoped memory for tpu_custom_call.1']
    %8 = vsyncpa [#allocation3], 0
    // Predicated region
    $region2: #{tpu_custom_call.1} parent=1 // pred_check
      _
    $region3: #{tpu_custom_call.1} parent=1 // pred_check_branch
      %10 = sbr.rel (0) target = $region5
    $region4: #{tpu_custom_call.1} parent=1 // pred_region
      _
    $region5: #{tpu_custom_call.1} parent=1 // pred_fallthru
      _
    // Predicated region
    $region6: #{tpu_custom_call.1} parent=1 // pred_check
      _
    $region7: #{tpu_custom_call.1} parent=1 // pred_check_branch
      %12 = sbr.rel (0) target = $region9
    $region8: #{tpu_custom_call.1} parent=1 // pred_region
      _
    $region9: #{tpu_custom_call.1} parent=1 // pred_fallthru
      _
    // Predicated region
    $region10: #{tpu_custom_call.1} parent=1 // pred_check
      _
    $region11: #{tpu_custom_call.1} parent=1 // pred_check_branch
      %14 = sbr.rel (0) target = $region13
    $region12: #{tpu_custom_call.1} parent=1 // pred_region
      _
    $region13: #{tpu_custom_call.1} parent=1 // pred_fallthru
      _
    %v15 = vld [vmem:[%s0] sm:$0xff]
    %v16 = vld [vmem:[%s0 + $0x8] sm:$0xff]
    %v17 = vld [vmem:[%s0 + $0x10] sm:$0xff]
    %v18 = vld [vmem:[%s0 + $0x18] sm:$0xff]
    %v19 = vld [vmem:[%s0 + $0x20] sm:$0xff]
    %v20 = vld [vmem:[%s0 + $0x28] sm:$0xff]
    %v21 = vld [vmem:[%s0 + $0x30] sm:$0xff]
    %v22 = vld [vmem:[%s0 + $0x38] sm:$0xff]
    %v23 = vld [vmem:[%s0 + $0x40] sm:$0xff]
    %v24 = vld [vmem:[%s0 + $0x48] sm:$0xff]
    %v25 = vld [vmem:[%s0 + $0x50] sm:$0xff]
    %v26 = vld [vmem:[%s0 + $0x58] sm:$0xff]
    %v27 = vld [vmem:[%s0 + $0x60] sm:$0xff]
    %v28 = vld [vmem:[%s0 + $0x68] sm:$0xff]
    %v29 = vld [vmem:[%s0 + $0x70] sm:$0xff]
    %v30 = vld [vmem:[%s0 + $0x78] sm:$0xff]
    %v31 = vld [vmem:[%s0 + $0x80] sm:$0xff]
    %v32 = vld [vmem:[%s0 + $0x88] sm:$0xff]
    %v33 = vld [vmem:[%s0 + $0x90] sm:$0xff]
    %v34 = vld [vmem:[%s0 + $0x98] sm:$0xff]
    %v35 = vld [vmem:[%s0 + $0xa0] sm:$0xff]
    %v36 = vld [vmem:[%s0 + $0xa8] sm:$0xff]
    %v37 = vld [vmem:[%s0 + $0xb0] sm:$0xff]
    %v38 = vld [vmem:[%s0 + $0xb8] sm:$0xff]
    %v39 = vld [vmem:[%s0 + $0xc0] sm:$0xff]
    %v40 = vld [vmem:[%s0 + $0xc8] sm:$0xff]
    %v41 = vld [vmem:[%s0 + $0xd0] sm:$0xff]
    %v42 = vld [vmem:[%s0 + $0xd8] sm:$0xff]
    %v43 = vld [vmem:[%s0 + $0xe0] sm:$0xff]
    %v44 = vld [vmem:[%s0 + $0xe8] sm:$0xff]
    %v45 = vld [vmem:[%s0 + $0xf0] sm:$0xff]
    %v46 = vld [vmem:[%s0 + $0xf8] sm:$0xff]
    %v47 = vld [vmem:[%s1] sm:$0xff]
    %v48 = vld [vmem:[%s1 + $0x8] sm:$0xff]
    %v49 = vld [vmem:[%s1 + $0x10] sm:$0xff]
    %v50 = vld [vmem:[%s1 + $0x18] sm:$0xff]
    %v51 = vld [vmem:[%s2] sm:$0x1]
    %v53 = vlaneseq
    %v54 = vshrl.u32 %v53, 7
    %v55 = vsub.s32 0, %v54
    %v56 = vrot.slane %v51, %v55
    %vm58 = vcmask 261120
    %v60 = vsel %vm58, %v15, 0
    %v63 = vsel %vm58, %v16, 0
    %v66 = vsel %vm58, %v17, 0
    %v69 = vsel %vm58, %v18, 0
    %v72 = vsel %vm58, %v19, 0
    %v75 = vsel %vm58, %v20, 0
    %v78 = vsel %vm58, %v21, 0
    %v81 = vsel %vm58, %v22, 0
    %v84 = vsel %vm58, %v23, 0
    %v87 = vsel %vm58, %v24, 0
    %v90 = vsel %vm58, %v25, 0
    %v93 = vsel %vm58, %v26, 0
    %v96 = vsel %vm58, %v27, 0
    %v99 = vsel %vm58, %v28, 0
    %v102 = vsel %vm58, %v29, 0
    %v105 = vsel %vm58, %v30, 0
    %v108 = vsel %vm58, %v31, 0
    %v111 = vsel %vm58, %v32, 0
    %v114 = vsel %vm58, %v33, 0
    %v117 = vsel %vm58, %v34, 0
    %v120 = vsel %vm58, %v35, 0
    %v123 = vsel %vm58, %v36, 0
    %v126 = vsel %vm58, %v37, 0
    %v129 = vsel %vm58, %v38, 0
    %v132 = vsel %vm58, %v39, 0
    %v135 = vsel %vm58, %v40, 0
    %v138 = vsel %vm58, %v41, 0
    %v141 = vsel %vm58, %v42, 0
    %v144 = vsel %vm58, %v43, 0
    %v147 = vsel %vm58, %v44, 0
    %v150 = vsel %vm58, %v45, 0
    %v153 = vsel %vm58, %v46, 0
    %155 = vmatprep.subr.mxu0 0.0
    %156 = vmatpush1.msra.mxu0 %v47
    %157 = vmatprep.subr.mxu0 0.0
    %158 = vmatpush1.msra.mxu0 %v48
    %159 = vmatprep.subr.mxu0 0.0
    %160 = vmatpush1.msra.mxu0 %v49
    %161 = vmatprep.subr.mxu0 0.0
    %162 = vmatpush1.msra.mxu0 %v50
    %163 = vmatprep.subr.mxu0 0.0
    %164 = vmatpush1.msra.mxu0 0.0
    %165 = vmatprep.subr.mxu0 0.0
    %166 = vmatpush1.msra.mxu0 0.0
    %167 = vmatprep.subr.mxu0 0.0
    %168 = vmatpush1.msra.mxu0 0.0
    %169 = vmatprep.subr.mxu0 0.0
    %170 = vmatpush1.msra.mxu0 0.0
    %171 = vmatprep.subr.mxu0 0.0
    %172 = vmatpush1.msra.mxu0 0.0
    %173 = vmatprep.subr.mxu0 0.0
    %174 = vmatpush1.msra.mxu0 0.0
    %175 = vmatprep.subr.mxu0 0.0
    %176 = vmatpush1.msra.mxu0 0.0
    %177 = vmatprep.subr.mxu0 0.0
    %178 = vmatpush1.msra.mxu0 0.0
    %179 = vmatprep.subr.mxu0 0.0
    %180 = vmatpush1.msra.mxu0 0.0
    %181 = vmatprep.subr.mxu0 0.0
    %182 = vmatpush1.msra.mxu0 0.0
    %183 = vmatprep.subr.mxu0 0.0
    %184 = vmatpush1.msra.mxu0 0.0
    %185 = vmatprep.subr.mxu0 0.0
    %186 = vmatpush1.msra.mxu0 0.0
    %187 = vmatprep.subr.mxu0 0.0
    %188 = vmatpush1.msra.mxu0 0.0
    %189 = vmatprep.subr.mxu0 0.0
    %190 = vmatpush1.msra.mxu0 0.0
    %191 = vmatprep.subr.mxu0 0.0
    %192 = vmatpush1.msra.mxu0 0.0
    %193 = vmatprep.subr.mxu0 0.0
    %194 = vmatpush1.msra.mxu0 0.0
    %195 = vmatprep.subr.mxu0 0.0
    %196 = vmatpush1.msra.mxu0 0.0
    %197 = vmatprep.subr.mxu0 0.0
    %198 = vmatpush1.msra.mxu0 0.0
    %199 = vmatprep.subr.mxu0 0.0
    %200 = vmatpush1.msra.mxu0 0.0
    %201 = vmatprep.subr.mxu0 0.0
    %202 = vmatpush1.msra.mxu0 0.0
    %203 = vmatprep.subr.mxu0 0.0
    %204 = vmatpush1.msra.mxu0 0.0
    %205 = vmatprep.subr.mxu0 0.0
    %206 = vmatpush1.msra.mxu0 0.0
    %207 = vmatprep.subr.mxu0 0.0
    %208 = vmatpush1.msra.mxu0 0.0
    %209 = vmatprep.subr.mxu0 0.0
    %210 = vmatpush1.msra.mxu0 0.0
    %211 = vmatprep.subr.mxu0 0.0
    %212 = vmatpush1.msra.mxu0 0.0
    %213 = vmatprep.subr.mxu0 0.0
    %214 = vmatpush1.msra.mxu0 0.0
    %215 = vmatprep.subr.mxu0 0.0
    %216 = vmatpush1.msra.mxu0 0.0
    %217 = vmatprep.subr.mxu0 0.0
    %218 = vmatpush1.msra.mxu0 0.0
    %219 = vmatprep.mubr.f32.mxu0 0.0
    %220 = vmatmul.mubr.f32.gmra.mrb[0].mxu0 %v60
    %v221 = vpop.f32.mrb[0].mxu0
    %v222 = vadd.f32 %v56, %v221
    %v223 = vpop.f32.mrb[0].mxu0
    %224 = vmatprep.mubr.f32.mxu0 0.0
    %225 = vmatmul.mubr.f32.gmra.mrb[0].mxu0 %v63
    %v226 = vpop.f32.mrb[0].mxu0
    %v227 = vadd.f32 %v56, %v226
    %v228 = vpop.f32.mrb[0].mxu0
    %229 = vmatprep.mubr.f32.mxu0 0.0
    %230 = vmatmul.mubr.f32.gmra.mrb[0].mxu0 %v66
    %v231 = vpop.f32.mrb[0].mxu0
    %v232 = vadd.f32 %v56, %v231
    %v233 = vpop.f32.mrb[0].mxu0
    %234 = vmatprep.mubr.f32.mxu0 0.0
    %235 = vmatmul.mubr.f32.gmra.mrb[0].mxu0 %v69
    %v236 = vpop.f32.mrb[0].mxu0
    %v237 = vadd.f32 %v56, %v236
    %v238 = vpop.f32.mrb[0].mxu0
    %239 = vmatprep.mubr.f32.mxu0 0.0
    %240 = vmatmul.mubr.f32.gmra.mrb[0].mxu0 %v72
    %v241 = vpop.f32.mrb[0].mxu0
    %v242 = vadd.f32 %v56, %v241
    %v243 = vpop.f32.mrb[0].mxu0
    %244 = vmatprep.mubr.f32.mxu0 0.0
    %245 = vmatmul.mubr.f32.gmra.mrb[0].mxu0 %v75
    %v246 = vpop.f32.mrb[0].mxu0
    %v247 = vadd.f32 %v56, %v246
    %v248 = vpop.f32.mrb[0].mxu0
    %249 = vmatprep.mubr.f32.mxu0 0.0
    %250 = vmatmul.mubr.f32.gmra.mrb[0].mxu0 %v78
    %v251 = vpop.f32.mrb[0].mxu0
    %v252 = vadd.f32 %v56, %v251
    %v253 = vpop.f32.mrb[0].mxu0
    %254 = vmatprep.mubr.f32.mxu0 0.0
    %255 = vmatmul.mubr.f32.gmra.mrb[0].mxu0 %v81
    %v256 = vpop.f32.mrb[0].mxu0
    %v257 = vadd.f32 %v56, %v256
    %v258 = vpop.f32.mrb[0].mxu0
    %259 = vmatprep.mubr.f32.mxu0 0.0
    %260 = vmatmul.mubr.f32.gmra.mrb[0].mxu0 %v84
    %v261 = vpop.f32.mrb[0].mxu0
    %v262 = vadd.f32 %v56, %v261
    %v263 = vpop.f32.mrb[0].mxu0
    %264 = vmatprep.mubr.f32.mxu0 0.0
    %265 = vmatmul.mubr.f32.gmra.mrb[0].mxu0 %v87
    %v266 = vpop.f32.mrb[0].mxu0
    %v267 = vadd.f32 %v56, %v266
    %v268 = vpop.f32.mrb[0].mxu0
    %269 = vmatprep.mubr.f32.mxu0 0.0
    %270 = vmatmul.mubr.f32.gmra.mrb[0].mxu0 %v90
    %v271 = vpop.f32.mrb[0].mxu0
    %v272 = vadd.f32 %v56, %v271
    %v273 = vpop.f32.mrb[0].mxu0
    %274 = vmatprep.mubr.f32.mxu0 0.0
    %275 = vmatmul.mubr.f32.gmra.mrb[0].mxu0 %v93
    %v276 = vpop.f32.mrb[0].mxu0
    %v277 = vadd.f32 %v56, %v276
    %v278 = vpop.f32.mrb[0].mxu0
    %279 = vmatprep.mubr.f32.mxu0 0.0
    %280 = vmatmul.mubr.f32.gmra.mrb[0].mxu0 %v96
    %v281 = vpop.f32.mrb[0].mxu0
    %v282 = vadd.f32 %v56, %v281
    %v283 = vpop.f32.mrb[0].mxu0
    %284 = vmatprep.mubr.f32.mxu0 0.0
    %285 = vmatmul.mubr.f32.gmra.mrb[0].mxu0 %v99
    %v286 = vpop.f32.mrb[0].mxu0
    %v287 = vadd.f32 %v56, %v286
    %v288 = vpop.f32.mrb[0].mxu0
    %289 = vmatprep.mubr.f32.mxu0 0.0
    %290 = vmatmul.mubr.f32.gmra.mrb[0].mxu0 %v102
    %v291 = vpop.f32.mrb[0].mxu0
    %v292 = vadd.f32 %v56, %v291
    %v293 = vpop.f32.mrb[0].mxu0
    %294 = vmatprep.mubr.f32.mxu0 0.0
    %295 = vmatmul.mubr.f32.gmra.mrb[0].mxu0 %v105
    %v296 = vpop.f32.mrb[0].mxu0
    %v297 = vadd.f32 %v56, %v296
    %v298 = vpop.f32.mrb[0].mxu0
    %299 = vmatprep.mubr.f32.mxu0 0.0
    %300 = vmatmul.mubr.f32.gmra.mrb[0].mxu0 %v108
    %v301 = vpop.f32.mrb[0].mxu0
    %v302 = vadd.f32 %v56, %v301
    %v303 = vpop.f32.mrb[0].mxu0
    %304 = vmatprep.mubr.f32.mxu0 0.0
    %305 = vmatmul.mubr.f32.gmra.mrb[0].mxu0 %v111
    %v306 = vpop.f32.mrb[0].mxu0
    %v307 = vadd.f32 %v56, %v306
    %v308 = vpop.f32.mrb[0].mxu0
    %309 = vmatprep.mubr.f32.mxu0 0.0
    %310 = vmatmul.mubr.f32.gmra.mrb[0].mxu0 %v114
    %v311 = vpop.f32.mrb[0].mxu0
    %v312 = vadd.f32 %v56, %v311
    %v313 = vpop.f32.mrb[0].mxu0
    %314 = vmatprep.mubr.f32.mxu0 0.0
    %315 = vmatmul.mubr.f32.gmra.mrb[0].mxu0 %v117
    %v316 = vpop.f32.mrb[0].mxu0
    %v317 = vadd.f32 %v56, %v316
    %v318 = vpop.f32.mrb[0].mxu0
    %319 = vmatprep.mubr.f32.mxu0 0.0
    %320 = vmatmul.mubr.f32.gmra.mrb[0].mxu0 %v120
    %v321 = vpop.f32.mrb[0].mxu0
    %v322 = vadd.f32 %v56, %v321
    %v323 = vpop.f32.mrb[0].mxu0
    %324 = vmatprep.mubr.f32.mxu0 0.0
    %325 = vmatmul.mubr.f32.gmra.mrb[0].mxu0 %v123
    %v326 = vpop.f32.mrb[0].mxu0
    %v327 = vadd.f32 %v56, %v326
    %v328 = vpop.f32.mrb[0].mxu0
    %329 = vmatprep.mubr.f32.mxu0 0.0
    %330 = vmatmul.mubr.f32.gmra.mrb[0].mxu0 %v126
    %v331 = vpop.f32.mrb[0].mxu0
    %v332 = vadd.f32 %v56, %v331
    %v333 = vpop.f32.mrb[0].mxu0
    %334 = vmatprep.mubr.f32.mxu0 0.0
    %335 = vmatmul.mubr.f32.gmra.mrb[0].mxu0 %v129
    %v336 = vpop.f32.mrb[0].mxu0
    %v337 = vadd.f32 %v56, %v336
    %v338 = vpop.f32.mrb[0].mxu0
    %339 = vmatprep.mubr.f32.mxu0 0.0
    %340 = vmatmul.mubr.f32.gmra.mrb[0].mxu0 %v132
    %v341 = vpop.f32.mrb[0].mxu0
    %v342 = vadd.f32 %v56, %v341
    %v343 = vpop.f32.mrb[0].mxu0
    %344 = vmatprep.mubr.f32.mxu0 0.0
    %345 = vmatmul.mubr.f32.gmra.mrb[0].mxu0 %v135
    %v346 = vpop.f32.mrb[0].mxu0
    %v347 = vadd.f32 %v56, %v346
    %v348 = vpop.f32.mrb[0].mxu0
    %349 = vmatprep.mubr.f32.mxu0 0.0
    %350 = vmatmul.mubr.f32.gmra.mrb[0].mxu0 %v138
    %v351 = vpop.f32.mrb[0].mxu0
    %v352 = vadd.f32 %v56, %v351
    %v353 = vpop.f32.mrb[0].mxu0
    %354 = vmatprep.mubr.f32.mxu0 0.0
    %355 = vmatmul.mubr.f32.gmra.mrb[0].mxu0 %v141
    %v356 = vpop.f32.mrb[0].mxu0
    %v357 = vadd.f32 %v56, %v356
    %v358 = vpop.f32.mrb[0].mxu0
    %359 = vmatprep.mubr.f32.mxu0 0.0
    %360 = vmatmul.mubr.f32.gmra.mrb[0].mxu0 %v144
    %v361 = vpop.f32.mrb[0].mxu0
    %v362 = vadd.f32 %v56, %v361
    %v363 = vpop.f32.mrb[0].mxu0
    %364 = vmatprep.mubr.f32.mxu0 0.0
    %365 = vmatmul.mubr.f32.gmra.mrb[0].mxu0 %v147
    %v366 = vpop.f32.mrb[0].mxu0
    %v367 = vadd.f32 %v56, %v366
    %v368 = vpop.f32.mrb[0].mxu0
    %369 = vmatprep.mubr.f32.mxu0 0.0
    %370 = vmatmul.mubr.f32.gmra.mrb[0].mxu0 %v150
    %v371 = vpop.f32.mrb[0].mxu0
    %v372 = vadd.f32 %v56, %v371
    %v373 = vpop.f32.mrb[0].mxu0
    %374 = vmatprep.mubr.f32.mxu0 0.0
    %375 = vmatmul.mubr.f32.gmra.mrb[0].mxu0 %v153
    %v376 = vpop.f32.mrb[0].mxu0
    %v377 = vadd.f32 %v56, %v376
    %v378 = vpop.f32.mrb[0].mxu0
    %379 = vdwg.mxu0
    %380 = vst [vmem:[#allocation2] sm:$0xff] %v222
    %381 = vst [vmem:[#allocation2 + $0x8] sm:$0xff] %v227
    %382 = vst [vmem:[#allocation2 + $0x10] sm:$0xff] %v232
    %383 = vst [vmem:[#allocation2 + $0x18] sm:$0xff] %v237
    %384 = vst [vmem:[#allocation2 + $0x20] sm:$0xff] %v242
    %385 = vst [vmem:[#allocation2 + $0x28] sm:$0xff] %v247
    %386 = vst [vmem:[#allocation2 + $0x30] sm:$0xff] %v252
    %387 = vst [vmem:[#allocation2 + $0x38] sm:$0xff] %v257
    %388 = vst [vmem:[#allocation2 + $0x40] sm:$0xff] %v262
    %389 = vst [vmem:[#allocation2 + $0x48] sm:$0xff] %v267
    %390 = vst [vmem:[#allocation2 + $0x50] sm:$0xff] %v272
    %391 = vst [vmem:[#allocation2 + $0x58] sm:$0xff] %v277
    %392 = vst [vmem:[#allocation2 + $0x60] sm:$0xff] %v282
    %393 = vst [vmem:[#allocation2 + $0x68] sm:$0xff] %v287
    %394 = vst [vmem:[#allocation2 + $0x70] sm:$0xff] %v292
    %395 = vst [vmem:[#allocation2 + $0x78] sm:$0xff] %v297
    %396 = vst [vmem:[#allocation2 + $0x80] sm:$0xff] %v302
    %397 = vst [vmem:[#allocation2 + $0x88] sm:$0xff] %v307
    %398 = vst [vmem:[#allocation2 + $0x90] sm:$0xff] %v312
    %399 = vst [vmem:[#allocation2 + $0x98] sm:$0xff] %v317
    %400 = vst [vmem:[#allocation2 + $0xa0] sm:$0xff] %v322
    %401 = vst [vmem:[#allocation2 + $0xa8] sm:$0xff] %v327
    %402 = vst [vmem:[#allocation2 + $0xb0] sm:$0xff] %v332
    %403 = vst [vmem:[#allocation2 + $0xb8] sm:$0xff] %v337
    %404 = vst [vmem:[#allocation2 + $0xc0] sm:$0xff] %v342
    %405 = vst [vmem:[#allocation2 + $0xc8] sm:$0xff] %v347
    %406 = vst [vmem:[#allocation2 + $0xd0] sm:$0xff] %v352
    %407 = vst [vmem:[#allocation2 + $0xd8] sm:$0xff] %v357
    %408 = vst [vmem:[#allocation2 + $0xe0] sm:$0xff] %v362
    %409 = vst [vmem:[#allocation2 + $0xe8] sm:$0xff] %v367
    %410 = vst [vmem:[#allocation2 + $0xf0] sm:$0xff] %v372
    %411 = vst [vmem:[#allocation2 + $0xf8] sm:$0xff] %v377
    // Predicated region
    $region14: #{tpu_custom_call.1} parent=1 // pred_check
      _
    $region15: #{tpu_custom_call.1} parent=1 // pred_check_branch
      %413 = sbr.rel (0) target = $region17
    $region16: #{tpu_custom_call.1} parent=1 // pred_region
      %s415 = ssub.s32 4096, 4096
      %416 = vsyncadd [#allocation3], %s415
      %s417 = sshll.u32 [#allocation2], 4
      %s418 = int_to_ptr.vmem [resolvable:$true] %s417
      %423 = dma.vmem_to_hbm [thread:$0]  %s418, 4096, %s3, [#allocation3], 128, 128, 8
    $region17: #{tpu_custom_call.1} parent=1 // pred_fallthru
      _
    // Predicated region
    $region18: #{tpu_custom_call.1} parent=1 // pred_check
      _
    $region19: #{tpu_custom_call.1} parent=1 // pred_check_branch
      %425 = sbr.rel (0) target = $region21
    $region20: #{tpu_custom_call.1} parent=1 // pred_region
      %426 = dma.done [#allocation3], 4096
    $region21: #{tpu_custom_call.1} parent=1 // pred_fallthru
      _
    %427 = vsyncpa [#allocation3], 1

</llo_original>
